<compile_context>
chip_gen: v7x
topology: tpu7x:2x2x1
jax: 0.10.0
libtpu: 0.0.40
codegen_flags: <defaults>
</compile_context>

<pallas_src>
import jax
import jax.numpy as jnp
from jax import lax
from jax.experimental import pallas as pl
from jax.experimental.pallas import tpu as pltpu

STATE_DIM = 10
ACTION_DIM = 1
HIDDEN_DIM = 128
MAX_ACTION = 250.0


def _round_up(x, m):
    return ((x + m - 1) // m) * m


def actor_kernel(x_ref, w1_ref, w2_ref, small_ref, o_ref):
    x = x_ref[...]                                   # (TB, S)  batch-major block
    w1 = w1_ref[...]                                 # (H, S)   PyTorch (out, in)
    w2 = w2_ref[...]                                 # (H, H)

    # Packed small operands: col0=b1, col1=b2, col2=w3 column, [0,3]=b3.
    small = small_ref[...]                           # (H, 8)
    b1 = small[:, 0:1]                               # (H, 1) -> broadcast over lanes
    b2 = small[:, 1:2]
    w3 = small[:, 2:3]
    b3 = small[0:1, 3:4]                             # (1, 1)

    # h1^T = W1 @ x^T : contract both operands' last (feature) axes, so the
    # batch-major tile feeds the MXU directly (no transposed HBM copy).
    h1 = lax.dot_general(w1, x, dimension_numbers=(((1,), (1,)), ((), ())),
                         preferred_element_type=jnp.float32)       # (H, TB)
    h1 = jnp.maximum(h1 + b1, 0.0)                                  # ReLU (VPU)

    h2 = jnp.dot(w2, h1, preferred_element_type=jnp.float32)        # (H, TB) MXU
    h2 = jnp.maximum(h2 + b2, 0.0)                                  # ReLU

    # Final Linear(H, 1): VPU multiply + cross-sublane (XLU) reduce -> one
    # lane-dense (1, TB) row; keeps the MXU free of a 1-wide matmul.
    a = jnp.sum(h2 * w3, axis=0, keepdims=True)                     # (1, TB)
    o_ref[...] = (jnp.tanh(a + b3) * MAX_ACTION).astype(o_ref.dtype)


def td3_forward(state, params, *, tile_b=4096):
    """state: (B, STATE_DIM) float32  ->  action: (B, ACTION_DIM) float32."""
    w1, b1, w2, b2, w3, b3 = params
    B = state.shape[0]

    # Lane-dense tiles: multiple of 128.  Large default amortizes the fixed
    # ~0.35 us per-grid-step overhead; working set stays ~10 MiB at 4096.
    tile_b = max(128, min(tile_b, _round_up(B, 128)))
    # Keep >= 2 grid steps when possible so the "parallel" axis can shard
    # across v7x's two TensorCores (no effect on 1-TC v5e/v6e).
    if tile_b >= 256 and _round_up(B, tile_b) == tile_b:
        tile_b = _round_up(tile_b // 2, 128)
    b_pad = _round_up(B, tile_b)
    num_tiles = b_pad // tile_b

    # Only pad the batch when needed (no extra HBM pass for aligned batches).
    x = state if b_pad == B else jnp.pad(state, ((0, b_pad - B), (0, 0)))

    # Pack the tiny resident operands into one (H, 8) block: 1 DMA instead of 4.
    small = jnp.zeros((HIDDEN_DIM, 8), jnp.float32)
    small = small.at[:, 0].set(b1.reshape(HIDDEN_DIM))
    small = small.at[:, 1].set(b2.reshape(HIDDEN_DIM))
    small = small.at[:, 2].set(w3.reshape(HIDDEN_DIM))
    small = small.at[0, 3].set(b3.reshape(())[()])

    flops = 2 * b_pad * (STATE_DIM * HIDDEN_DIM
                         + HIDDEN_DIM * HIDDEN_DIM + HIDDEN_DIM)
    bytes_accessed = 4 * (int(x.size) + int(w1.size) + int(w2.size)
                          + int(small.size) + b_pad)

    resident = lambda i: (0, 0)   # same block every step -> stays in VMEM

    out_t = pl.pallas_call(
        actor_kernel,
        out_shape=jax.ShapeDtypeStruct((1, b_pad), jnp.float32),
        grid_spec=pltpu.PrefetchScalarGridSpec(
            num_scalar_prefetch=0,
            grid=(num_tiles,),
            in_specs=[
                pl.BlockSpec((tile_b, STATE_DIM), lambda i: (i, 0)),  # x tile
                pl.BlockSpec((HIDDEN_DIM, STATE_DIM), resident),      # W1 (out,in)
                pl.BlockSpec((HIDDEN_DIM, HIDDEN_DIM), resident),     # W2 (out,in)
                pl.BlockSpec((HIDDEN_DIM, 8), resident),              # b1|b2|w3|b3
            ],
            out_specs=pl.BlockSpec((1, tile_b), lambda i: (0, i)),    # lane-dense
        ),
        compiler_params=pltpu.CompilerParams(
            dimension_semantics=("parallel",),
            vmem_limit_bytes=48 * 1024 * 1024),   # v5e default is only 16 MiB
        cost_estimate=pl.CostEstimate(
            flops=flops, transcendentals=b_pad, bytes_accessed=bytes_accessed),
    )(x, w1, w2, small)

    # Padded lanes hold tanh(b3)*250 garbage; slice them off.
    return out_t[0, :B].reshape(B, ACTION_DIM)


def init_params(key):
    """Deterministic init mimicking nn.Linear's U(-1/sqrt(fan_in), 1/sqrt(fan_in)).

    Weights kept in PyTorch's (out_features, in_features) layout; biases as
    (out_features,) vectors.
    """
    def linear(key, fan_in, fan_out):
        kw, kb = jax.random.split(key)
        bound = 1.0 / jnp.sqrt(float(fan_in))
        w = jax.random.uniform(kw, (fan_out, fan_in), jnp.float32, -bound, bound)
        b = jax.random.uniform(kb, (fan_out,), jnp.float32, -bound, bound)
        return w, b

    k1, k2, k3 = jax.random.split(key, 3)
    w1, b1 = linear(k1, STATE_DIM, HIDDEN_DIM)      # (128, 10), (128,)
    w2, b2 = linear(k2, HIDDEN_DIM, HIDDEN_DIM)     # (128, 128), (128,)
    w3, b3 = linear(k3, HIDDEN_DIM, ACTION_DIM)     # (1, 128),  (1,)
    return (w1, b1, w2, b2, w3, b3)


def td3_forward_ref(state, params):
    """Pure-JAX reference for correctness check."""
    w1, b1, w2, b2, w3, b3 = params
    h1 = jnp.maximum(state @ w1.T + b1, 0.0)
    h2 = jnp.maximum(h1 @ w2.T + b2, 0.0)
    return jnp.tanh(h2 @ w3.T + b3) * MAX_ACTION


# TODO(synk): get_q_values (critic1/critic2) not exercised by forward(); omitted.

if __name__ == "__main__":
    key = jax.random.PRNGKey(0)
    kp, kx = jax.random.split(key)
    params = init_params(kp)

    B = 8  # small batch
    state = jax.random.normal(kx, (B, STATE_DIM), jnp.float32)

    out = td3_forward(state, params)
    out = jax.block_until_ready(out)

    ref = td3_forward_ref(state, params)
    assert out.shape == (B, ACTION_DIM)
    assert jnp.allclose(out, ref, atol=1e-3, rtol=1e-3)

    print("KERNEL_OK")
</pallas_src>

<mosaic_0001>
module attributes {stable_mosaic.version = 11 : i64} {
  func.func @actor_kernel(%arg0: i32, %arg1: memref<128x10xf32, #tpu.memory_space<vmem>>, %arg2: memref<128x10xf32, #tpu.memory_space<vmem>>, %arg3: memref<128x128xf32, #tpu.memory_space<vmem>>, %arg4: memref<128x8xf32, #tpu.memory_space<vmem>>, %arg5: memref<1x128xf32, #tpu.memory_space<vmem>>) attributes {dimension_semantics = [#tpu.dimension_semantics<parallel>], iteration_bounds = array<i64: 1>, scalar_prefetch = 0 : i64, scratch_operands = 0 : i64, tpu.core_type = #tpu.core_type<tc>, window_params = [{transform_indices = @transform_0, window_bounds = array<i64: 128, 10>}, {pipeline_mode = #tpu.pipeline_mode<synchronous>, transform_indices = @transform_1, window_bounds = array<i64: 128, 10>}, {pipeline_mode = #tpu.pipeline_mode<synchronous>, transform_indices = @transform_2, window_bounds = array<i64: 128, 128>}, {pipeline_mode = #tpu.pipeline_mode<synchronous>, transform_indices = @transform_3, window_bounds = array<i64: 128, 8>}, {transform_indices = @transform_4, window_bounds = array<i64: 1, 128>}]} {
    %c0 = arith.constant 0 : index
    %c0_0 = arith.constant 0 : index
    %0 = vector.load %arg1[%c0, %c0_0] : memref<128x10xf32, #tpu.memory_space<vmem>>, vector<128x10xf32>
    %c0_1 = arith.constant 0 : index
    %c0_2 = arith.constant 0 : index
    %1 = vector.load %arg2[%c0_1, %c0_2] : memref<128x10xf32, #tpu.memory_space<vmem>>, vector<128x10xf32>
    %c0_3 = arith.constant 0 : index
    %c0_4 = arith.constant 0 : index
    %2 = vector.load %arg3[%c0_3, %c0_4] : memref<128x128xf32, #tpu.memory_space<vmem>>, vector<128x128xf32>
    %c0_5 = arith.constant 0 : index
    %c0_6 = arith.constant 0 : index
    %3 = vector.load %arg4[%c0_5, %c0_6] : memref<128x8xf32, #tpu.memory_space<vmem>>, vector<128x8xf32>
    %4 = vector.extract_strided_slice %3 {offsets = [0, 0], sizes = [128, 1], strides = [1, 1]} : vector<128x8xf32> to vector<128x1xf32>
    %5 = vector.extract_strided_slice %3 {offsets = [0, 1], sizes = [128, 1], strides = [1, 1]} : vector<128x8xf32> to vector<128x1xf32>
    %6 = vector.extract_strided_slice %3 {offsets = [0, 2], sizes = [128, 1], strides = [1, 1]} : vector<128x8xf32> to vector<128x1xf32>
    %7 = vector.extract_strided_slice %3 {offsets = [0, 3], sizes = [1, 1], strides = [1, 1]} : vector<128x8xf32> to vector<1x1xf32>
    %cst = arith.constant dense<0.000000e+00> : vector<128x128xf32>
    %8 = tpu.matmul %1, %0, %cst {dimension_numbers = #tpu.dot_dimension_numbers<[1], [1], [0], [0], [0, 0, 1, 0], [], []>} : vector<128x10xf32>, vector<128x10xf32>, vector<128x128xf32> -> vector<128x128xf32>
    %9 = vector.broadcast %4 : vector<128x1xf32> to vector<128x128xf32>
    %10 = arith.addf %8, %9 : vector<128x128xf32>
    %cst_7 = arith.constant 0.000000e+00 : f32
    %11 = vector.broadcast %cst_7 : f32 to vector<128x128xf32>
    %12 = arith.maximumf %10, %11 : vector<128x128xf32>
    %cst_8 = arith.constant dense<0.000000e+00> : vector<128x128xf32>
    %13 = tpu.matmul %2, %12, %cst_8 {dimension_numbers = #tpu.dot_dimension_numbers<[1], [0], [0], [1], [0, 0, 1, 1], [], []>} : vector<128x128xf32>, vector<128x128xf32>, vector<128x128xf32> -> vector<128x128xf32>
    %14 = vector.broadcast %5 : vector<128x1xf32> to vector<128x128xf32>
    %15 = arith.addf %13, %14 : vector<128x128xf32>
    %cst_9 = arith.constant 0.000000e+00 : f32
    %16 = vector.broadcast %cst_9 : f32 to vector<128x128xf32>
    %17 = arith.maximumf %15, %16 : vector<128x128xf32>
    %18 = vector.broadcast %6 : vector<128x1xf32> to vector<128x128xf32>
    %19 = arith.mulf %17, %18 : vector<128x128xf32>
    %cst_10 = arith.constant dense<0.000000e+00> : vector<128xf32>
    %20 = vector.multi_reduction <add>, %19, %cst_10 [0] : vector<128x128xf32> to vector<128xf32>
    %21 = vector.shape_cast %20 : vector<128xf32> to vector<1x128xf32>
    %22 = vector.broadcast %7 : vector<1x1xf32> to vector<1x128xf32>
    %23 = arith.addf %21, %22 : vector<1x128xf32>
    %24 = math.tanh %23 : vector<1x128xf32>
    %cst_11 = arith.constant 2.500000e+02 : f32
    %25 = vector.broadcast %cst_11 : f32 to vector<1x128xf32>
    %26 = arith.mulf %24, %25 : vector<1x128xf32>
    %c0_12 = arith.constant 0 : index
    %c0_13 = arith.constant 0 : index
    %27 = vector.load %arg5[%c0_12, %c0_13] : memref<1x128xf32, #tpu.memory_space<vmem>>, vector<1x128xf32>
    tpu.vector_store %arg5[%c0_12, %c0_13], %26 {strides = array<i32>} : memref<1x128xf32, #tpu.memory_space<vmem>>, vector<1x128xf32>,
    return
  }
  func.func @transform_0(%arg0: i32) -> (i32, i32) {
    %c0_i32 = arith.constant 0 : i32
    %c0_i32_0 = arith.constant 0 : i32
    return %arg0, %c0_i32 : i32, i32
  }
  func.func @transform_1(%arg0: i32) -> (i32, i32) {
    %c0_i32 = arith.constant 0 : i32
    %c0_i32_0 = arith.constant 0 : i32
    %c0_i32_1 = arith.constant 0 : i32
    return %c0_i32, %c0_i32_0 : i32, i32
  }
  func.func @transform_2(%arg0: i32) -> (i32, i32) {
    %c0_i32 = arith.constant 0 : i32
    %c0_i32_0 = arith.constant 0 : i32
    %c0_i32_1 = arith.constant 0 : i32
    return %c0_i32, %c0_i32_0 : i32, i32
  }
  func.func @transform_3(%arg0: i32) -> (i32, i32) {
    %c0_i32 = arith.constant 0 : i32
    %c0_i32_0 = arith.constant 0 : i32
    %c0_i32_1 = arith.constant 0 : i32
    return %c0_i32, %c0_i32_0 : i32, i32
  }
  func.func @transform_4(%arg0: i32) -> (i32, i32) {
    %c0_i32 = arith.constant 0 : i32
    %c0_i32_0 = arith.constant 0 : i32
    return %c0_i32, %arg0 : i32, i32
  }
}

</mosaic_0001>

<llo_original>
// kernel: tpu_custom_call.1
$region0: #{tpu_custom_call.1}
  #allocation0 [shape = 'u32[]', space=smem, size = 0x4, offset = 0x4, fixed_abs, tag = 'smem constant byte address 0x4 - core index']
  #allocation1 [shape = 'u32[144,128]{1,0:T(1,128)}', space=vmem, size = 0x12000, scoped, tag = 'internal scratch']
  %s0 = inlined_call_operand.vmem [shape: f32[128,10], index: 0, kind: input, shape index: {}]
  %s1 = inlined_call_operand.vmem [shape: f32[128,10], index: 1, kind: input, shape index: {}]
  %s2 = inlined_call_operand.vmem [shape: f32[128,128], index: 2, kind: input, shape index: {}]
  %s3 = inlined_call_operand.vmem [shape: f32[128,8], index: 3, kind: input, shape index: {}]
  %s4 = inlined_call_operand.hbm [shape: f32[1,128], index: 4, kind: output, shape index: {}]
  %s5 = sld [smem:[#allocation0]]
  $region26: #{tpu_custom_call.1} parent=0
    _
  %s7 = ssub.s32 1, %s5
  %s8 = scalar_select 0, %s7, %s5
  $region1: #{tpu_custom_call.1} parent=0
    #allocation2 [shape = 'u8[512]{0}', space=vmem, size = 0x400, scoped, tag = 'output window, operand 0, single buffered']
    #allocation3 [shape = 's32[1]{0}', space=sflag, size = 0x4, scoped, tag = 'scoped memory for tpu_custom_call.1']
    %9 = vsyncpa [#allocation3], 0
    // Predicated region
    $region2: #{tpu_custom_call.1} parent=1 // pred_check
      _
    $region3: #{tpu_custom_call.1} parent=1 // pred_check_branch
      %11 = sbr.rel (0) target = $region5
    $region4: #{tpu_custom_call.1} parent=1 // pred_region
      _
    $region5: #{tpu_custom_call.1} parent=1 // pred_fallthru
      _
    // Predicated region
    $region6: #{tpu_custom_call.1} parent=1 // pred_check
      _
    $region7: #{tpu_custom_call.1} parent=1 // pred_check_branch
      %13 = sbr.rel (0) target = $region9
    $region8: #{tpu_custom_call.1} parent=1 // pred_region
      _
    $region9: #{tpu_custom_call.1} parent=1 // pred_fallthru
      _
    // Predicated region
    $region10: #{tpu_custom_call.1} parent=1 // pred_check
      _
    $region11: #{tpu_custom_call.1} parent=1 // pred_check_branch
      %15 = sbr.rel (0) target = $region13
    $region12: #{tpu_custom_call.1} parent=1 // pred_region
      _
    $region13: #{tpu_custom_call.1} parent=1 // pred_fallthru
      _
    // Predicated region
    $region14: #{tpu_custom_call.1} parent=1 // pred_check
      _
    $region15: #{tpu_custom_call.1} parent=1 // pred_check_branch
      %17 = sbr.rel (0) target = $region17
    $region16: #{tpu_custom_call.1} parent=1 // pred_region
      _
    $region17: #{tpu_custom_call.1} parent=1 // pred_fallthru
      _
    %v18 = vld [vmem:[%s0] sm:$0xff]
    %v19 = vld [vmem:[%s0 + $0x8] sm:$0xff]
    %v20 = vld [vmem:[%s0 + $0x10] sm:$0xff]
    %v21 = vld [vmem:[%s0 + $0x18] sm:$0xff]
    %v22 = vld [vmem:[%s0 + $0x20] sm:$0xff]
    %v23 = vld [vmem:[%s0 + $0x28] sm:$0xff]
    %v24 = vld [vmem:[%s0 + $0x30] sm:$0xff]
    %v25 = vld [vmem:[%s0 + $0x38] sm:$0xff]
    %v26 = vld [vmem:[%s0 + $0x40] sm:$0xff]
    %v27 = vld [vmem:[%s0 + $0x48] sm:$0xff]
    %v28 = vld [vmem:[%s0 + $0x50] sm:$0xff]
    %v29 = vld [vmem:[%s0 + $0x58] sm:$0xff]
    %v30 = vld [vmem:[%s0 + $0x60] sm:$0xff]
    %v31 = vld [vmem:[%s0 + $0x68] sm:$0xff]
    %v32 = vld [vmem:[%s0 + $0x70] sm:$0xff]
    %v33 = vld [vmem:[%s0 + $0x78] sm:$0xff]
    %v34 = vld [vmem:[%s1] sm:$0xff]
    %v35 = vld [vmem:[%s1 + $0x8] sm:$0xff]
    %v36 = vld [vmem:[%s1 + $0x10] sm:$0xff]
    %v37 = vld [vmem:[%s1 + $0x18] sm:$0xff]
    %v38 = vld [vmem:[%s1 + $0x20] sm:$0xff]
    %v39 = vld [vmem:[%s1 + $0x28] sm:$0xff]
    %v40 = vld [vmem:[%s1 + $0x30] sm:$0xff]
    %v41 = vld [vmem:[%s1 + $0x38] sm:$0xff]
    %v42 = vld [vmem:[%s1 + $0x40] sm:$0xff]
    %v43 = vld [vmem:[%s1 + $0x48] sm:$0xff]
    %v44 = vld [vmem:[%s1 + $0x50] sm:$0xff]
    %v45 = vld [vmem:[%s1 + $0x58] sm:$0xff]
    %v46 = vld [vmem:[%s1 + $0x60] sm:$0xff]
    %v47 = vld [vmem:[%s1 + $0x68] sm:$0xff]
    %v48 = vld [vmem:[%s1 + $0x70] sm:$0xff]
    %v49 = vld [vmem:[%s1 + $0x78] sm:$0xff]
    %v50 = vld [vmem:[%s2] sm:$0xff]
    %v51 = vld [vmem:[%s2 + $0x8] sm:$0xff]
    %v52 = vld [vmem:[%s2 + $0x10] sm:$0xff]
    %v53 = vld [vmem:[%s2 + $0x18] sm:$0xff]
    %v54 = vld [vmem:[%s2 + $0x20] sm:$0xff]
    %v55 = vld [vmem:[%s2 + $0x28] sm:$0xff]
    %v56 = vld [vmem:[%s2 + $0x30] sm:$0xff]
    %v57 = vld [vmem:[%s2 + $0x38] sm:$0xff]
    %v58 = vld [vmem:[%s2 + $0x40] sm:$0xff]
    %v59 = vld [vmem:[%s2 + $0x48] sm:$0xff]
    %v60 = vld [vmem:[%s2 + $0x50] sm:$0xff]
    %v61 = vld [vmem:[%s2 + $0x58] sm:$0xff]
    %v62 = vld [vmem:[%s2 + $0x60] sm:$0xff]
    %v63 = vld [vmem:[%s2 + $0x68] sm:$0xff]
    %v64 = vld [vmem:[%s2 + $0x70] sm:$0xff]
    %v65 = vld [vmem:[%s2 + $0x78] sm:$0xff]
    %v66 = vld [vmem:[%s3] sm:$0xff]
    %v67 = vld [vmem:[%s3 + $0x8] sm:$0xff]
    %v68 = vld [vmem:[%s3 + $0x10] sm:$0xff]
    %v69 = vld [vmem:[%s3 + $0x18] sm:$0xff]
    %v70 = vld [vmem:[%s3 + $0x20] sm:$0xff]
    %v71 = vld [vmem:[%s3 + $0x28] sm:$0xff]
    %v72 = vld [vmem:[%s3 + $0x30] sm:$0xff]
    %v73 = vld [vmem:[%s3 + $0x38] sm:$0xff]
    %v74 = vld [vmem:[%s3 + $0x40] sm:$0xff]
    %v75 = vld [vmem:[%s3 + $0x48] sm:$0xff]
    %v76 = vld [vmem:[%s3 + $0x50] sm:$0xff]
    %v77 = vld [vmem:[%s3 + $0x58] sm:$0xff]
    %v78 = vld [vmem:[%s3 + $0x60] sm:$0xff]
    %v79 = vld [vmem:[%s3 + $0x68] sm:$0xff]
    %v80 = vld [vmem:[%s3 + $0x70] sm:$0xff]
    %v81 = vld [vmem:[%s3 + $0x78] sm:$0xff]
    %83 = vset.pattern.permute.xlu0 0
    %84 = vperm.xlu0 %83, %v66
    %v85 = vpop.permute.xlu0 %84
    %88 = vset.pattern.permute.xlu0 0
    %89 = vperm.xlu0 %88, %v67
    %v90 = vpop.permute.xlu0 %89
    %93 = vset.pattern.permute.xlu0 0
    %94 = vperm.xlu0 %93, %v68
    %v95 = vpop.permute.xlu0 %94
    %98 = vset.pattern.permute.xlu0 0
    %99 = vperm.xlu0 %98, %v69
    %v100 = vpop.permute.xlu0 %99
    %103 = vset.pattern.permute.xlu0 0
    %104 = vperm.xlu0 %103, %v70
    %v105 = vpop.permute.xlu0 %104
    %108 = vset.pattern.permute.xlu0 0
    %109 = vperm.xlu0 %108, %v71
    %v110 = vpop.permute.xlu0 %109
    %113 = vset.pattern.permute.xlu0 0
    %114 = vperm.xlu0 %113, %v72
    %v115 = vpop.permute.xlu0 %114
    %118 = vset.pattern.permute.xlu0 0
    %119 = vperm.xlu0 %118, %v73
    %v120 = vpop.permute.xlu0 %119
    %123 = vset.pattern.permute.xlu0 0
    %124 = vperm.xlu0 %123, %v74
    %v125 = vpop.permute.xlu0 %124
    %128 = vset.pattern.permute.xlu0 0
    %129 = vperm.xlu0 %128, %v75
    %v130 = vpop.permute.xlu0 %129
    %133 = vset.pattern.permute.xlu0 0
    %134 = vperm.xlu0 %133, %v76
    %v135 = vpop.permute.xlu0 %134
    %138 = vset.pattern.permute.xlu0 0
    %139 = vperm.xlu0 %138, %v77
    %v140 = vpop.permute.xlu0 %139
    %143 = vset.pattern.permute.xlu0 0
    %144 = vperm.xlu0 %143, %v78
    %v145 = vpop.permute.xlu0 %144
    %148 = vset.pattern.permute.xlu0 0
    %149 = vperm.xlu0 %148, %v79
    %v150 = vpop.permute.xlu0 %149
    %153 = vset.pattern.permute.xlu0 0
    %154 = vperm.xlu0 %153, %v80
    %v155 = vpop.permute.xlu0 %154
    %158 = vset.pattern.permute.xlu0 0
    %159 = vperm.xlu0 %158, %v81
    %v160 = vpop.permute.xlu0 %159
    %vm162 = vcmask 80896
    %v164 = vsel %vm162, %v34, 0
    %v167 = vsel %vm162, %v35, 0
    %v170 = vsel %vm162, %v36, 0
    %v173 = vsel %vm162, %v37, 0
    %v176 = vsel %vm162, %v38, 0
    %v179 = vsel %vm162, %v39, 0
    %v182 = vsel %vm162, %v40, 0
    %v185 = vsel %vm162, %v41, 0
    %v188 = vsel %vm162, %v42, 0
    %v191 = vsel %vm162, %v43, 0
    %v194 = vsel %vm162, %v44, 0
    %v197 = vsel %vm162, %v45, 0
    %v200 = vsel %vm162, %v46, 0
    %v203 = vsel %vm162, %v47, 0
    %v206 = vsel %vm162, %v48, 0
    %v209 = vsel %vm162, %v49, 0
    %v212 = vsel %vm162, %v18, 0
    %v215 = vsel %vm162, %v19, 0
    %v218 = vsel %vm162, %v20, 0
    %v221 = vsel %vm162, %v21, 0
    %v224 = vsel %vm162, %v22, 0
    %v227 = vsel %vm162, %v23, 0
    %v230 = vsel %vm162, %v24, 0
    %v233 = vsel %vm162, %v25, 0
    %v236 = vsel %vm162, %v26, 0
    %v239 = vsel %vm162, %v27, 0
    %v242 = vsel %vm162, %v28, 0
    %v245 = vsel %vm162, %v29, 0
    %v248 = vsel %vm162, %v30, 0
    %v251 = vsel %vm162, %v31, 0
    %v254 = vsel %vm162, %v32, 0
    %v257 = vsel %vm162, %v33, 0
    %259 = vmatprep.subr.mxu0 0.0
    %260 = vmatpush1.xpose.msra.mxu0 %v212
    %261 = vmatprep.subr.mxu0 0.0
    %262 = vmatpush1.xpose.msra.mxu0 %v215
    %263 = vmatprep.subr.mxu0 0.0
    %264 = vmatpush1.xpose.msra.mxu0 %v218
    %265 = vmatprep.subr.mxu0 0.0
    %266 = vmatpush1.xpose.msra.mxu0 %v221
    %267 = vmatprep.subr.mxu0 0.0
    %268 = vmatpush1.xpose.msra.mxu0 %v224
    %269 = vmatprep.subr.mxu0 0.0
    %270 = vmatpush1.xpose.msra.mxu0 %v227
    %271 = vmatprep.subr.mxu0 0.0
    %272 = vmatpush1.xpose.msra.mxu0 %v230
    %273 = vmatprep.subr.mxu0 0.0
    %274 = vmatpush1.xpose.msra.mxu0 %v233
    %275 = vmatprep.subr.mxu0 0.0
    %276 = vmatpush1.xpose.msra.mxu0 %v236
    %277 = vmatprep.subr.mxu0 0.0
    %278 = vmatpush1.xpose.msra.mxu0 %v239
    %279 = vmatprep.subr.mxu0 0.0
    %280 = vmatpush1.xpose.msra.mxu0 %v242
    %281 = vmatprep.subr.mxu0 0.0
    %282 = vmatpush1.xpose.msra.mxu0 %v245
    %283 = vmatprep.subr.mxu0 0.0
    %284 = vmatpush1.xpose.msra.mxu0 %v248
    %285 = vmatprep.subr.mxu0 0.0
    %286 = vmatpush1.xpose.msra.mxu0 %v251
    %287 = vmatprep.subr.mxu0 0.0
    %288 = vmatpush1.xpose.msra.mxu0 %v254
    %289 = vmatprep.subr.mxu0 0.0
    %290 = vmatpush1.xpose.msra.mxu0 %v257
    %291 = vmatprep.subr.mxu0 0.0
    %292 = vmatpush1.xpose.msra.mxu0 0.0
    %293 = vmatprep.subr.mxu0 0.0
    %294 = vmatpush1.xpose.msra.mxu0 0.0
    %295 = vmatprep.subr.mxu0 0.0
    %296 = vmatpush1.xpose.msra.mxu0 0.0
    %297 = vmatprep.subr.mxu0 0.0
    %298 = vmatpush1.xpose.msra.mxu0 0.0
    %299 = vmatprep.subr.mxu0 0.0
    %300 = vmatpush1.xpose.msra.mxu0 0.0
    %301 = vmatprep.subr.mxu0 0.0
    %302 = vmatpush1.xpose.msra.mxu0 0.0
    %303 = vmatprep.subr.mxu0 0.0
    %304 = vmatpush1.xpose.msra.mxu0 0.0
    %305 = vmatprep.subr.mxu0 0.0
    %306 = vmatpush1.xpose.msra.mxu0 0.0
    %307 = vmatprep.subr.mxu0 0.0
    %308 = vmatpush1.xpose.msra.mxu0 0.0
    %309 = vmatprep.subr.mxu0 0.0
    %310 = vmatpush1.xpose.msra.mxu0 0.0
    %311 = vmatprep.subr.mxu0 0.0
    %312 = vmatpush1.xpose.msra.mxu0 0.0
    %313 = vmatprep.subr.mxu0 0.0
    %314 = vmatpush1.xpose.msra.mxu0 0.0
    %315 = vmatprep.subr.mxu0 0.0
    %316 = vmatpush1.xpose.msra.mxu0 0.0
    %317 = vmatprep.subr.mxu0 0.0
    %318 = vmatpush1.xpose.msra.mxu0 0.0
    %319 = vmatprep.subr.mxu0 0.0
    %320 = vmatpush1.xpose.msra.mxu0 0.0
    %321 = vmatprep.subr.mxu0 0.0
    %322 = vmatpush1.xpose.msra.mxu0 0.0
    %323 = vmatprep.mubr.f32.mxu0 0.0
    %324 = vmatmul.mubr.f32.gmra.mrb[0].mxu0 %v164
    %v325 = vpop.f32.mrb[0].mxu0
    %v326 = vadd.f32 %v85, %v325
    %v327 = vpop.f32.mrb[0].mxu0
    %328 = vmatprep.mubr.f32.mxu0 0.0
    %329 = vmatmul.mubr.f32.gmra.mrb[0].mxu0 %v167
    %v330 = vpop.f32.mrb[0].mxu0
    %v331 = vadd.f32 %v90, %v330
    %v332 = vpop.f32.mrb[0].mxu0
    %333 = vmatprep.mubr.f32.mxu0 0.0
    %334 = vmatmul.mubr.f32.gmra.mrb[0].mxu0 %v170
    %v335 = vpop.f32.mrb[0].mxu0
    %v336 = vadd.f32 %v95, %v335
    %v337 = vpop.f32.mrb[0].mxu0
    %338 = vmatprep.mubr.f32.mxu0 0.0
    %339 = vmatmul.mubr.f32.gmra.mrb[0].mxu0 %v173
    %v340 = vpop.f32.mrb[0].mxu0
    %v341 = vadd.f32 %v100, %v340
    %v342 = vpop.f32.mrb[0].mxu0
    %343 = vmatprep.mubr.f32.mxu0 0.0
    %344 = vmatmul.mubr.f32.gmra.mrb[0].mxu0 %v176
    %v345 = vpop.f32.mrb[0].mxu0
    %v346 = vadd.f32 %v105, %v345
    %v347 = vpop.f32.mrb[0].mxu0
    %348 = vmatprep.mubr.f32.mxu0 0.0
    %349 = vmatmul.mubr.f32.gmra.mrb[0].mxu0 %v179
    %v350 = vpop.f32.mrb[0].mxu0
    %v351 = vadd.f32 %v110, %v350
    %v352 = vpop.f32.mrb[0].mxu0
    %353 = vmatprep.mubr.f32.mxu0 0.0
    %354 = vmatmul.mubr.f32.gmra.mrb[0].mxu0 %v182
    %v355 = vpop.f32.mrb[0].mxu0
    %v356 = vadd.f32 %v115, %v355
    %v357 = vpop.f32.mrb[0].mxu0
    %358 = vmatprep.mubr.f32.mxu0 0.0
    %359 = vmatmul.mubr.f32.gmra.mrb[0].mxu0 %v185
    %v360 = vpop.f32.mrb[0].mxu0
    %v361 = vadd.f32 %v120, %v360
    %v362 = vpop.f32.mrb[0].mxu0
    %363 = vmatprep.mubr.f32.mxu0 0.0
    %364 = vmatmul.mubr.f32.gmra.mrb[0].mxu0 %v188
    %v365 = vpop.f32.mrb[0].mxu0
    %v366 = vadd.f32 %v125, %v365
    %v367 = vpop.f32.mrb[0].mxu0
    %368 = vmatprep.mubr.f32.mxu0 0.0
    %369 = vmatmul.mubr.f32.gmra.mrb[0].mxu0 %v191
    %v370 = vpop.f32.mrb[0].mxu0
    %v371 = vadd.f32 %v130, %v370
    %v372 = vpop.f32.mrb[0].mxu0
    %373 = vmatprep.mubr.f32.mxu0 0.0
    %374 = vmatmul.mubr.f32.gmra.mrb[0].mxu0 %v194
    %v375 = vpop.f32.mrb[0].mxu0
    %v376 = vadd.f32 %v135, %v375
    %v377 = vpop.f32.mrb[0].mxu0
    %378 = vmatprep.mubr.f32.mxu0 0.0
    %379 = vmatmul.mubr.f32.gmra.mrb[0].mxu0 %v197
    %v380 = vpop.f32.mrb[0].mxu0
    %v381 = vadd.f32 %v140, %v380
    %v382 = vpop.f32.mrb[0].mxu0
    %383 = vmatprep.mubr.f32.mxu0 0.0
    %384 = vmatmul.mubr.f32.gmra.mrb[0].mxu0 %v200
    %v385 = vpop.f32.mrb[0].mxu0
    %v386 = vadd.f32 %v145, %v385
    %v387 = vpop.f32.mrb[0].mxu0
    %388 = vmatprep.mubr.f32.mxu0 0.0
    %389 = vmatmul.mubr.f32.gmra.mrb[0].mxu0 %v203
    %v390 = vpop.f32.mrb[0].mxu0
    %v391 = vadd.f32 %v150, %v390
    %v392 = vpop.f32.mrb[0].mxu0
    %393 = vmatprep.mubr.f32.mxu0 0.0
    %394 = vmatmul.mubr.f32.gmra.mrb[0].mxu0 %v206
    %v395 = vpop.f32.mrb[0].mxu0
    %v396 = vadd.f32 %v155, %v395
    %v397 = vpop.f32.mrb[0].mxu0
    %398 = vmatprep.mubr.f32.mxu0 0.0
    %399 = vmatmul.mubr.f32.gmra.mrb[0].mxu0 %v209
    %v400 = vpop.f32.mrb[0].mxu0
    %v401 = vadd.f32 %v160, %v400
    %v402 = vpop.f32.mrb[0].mxu0
    %403 = vdwg.mxu0
    %v404 = vmax.f32 %v326, 0.0
    %v405 = vmax.f32 %v331, 0.0
    %v406 = vmax.f32 %v336, 0.0
    %v407 = vmax.f32 %v341, 0.0
    %v408 = vmax.f32 %v346, 0.0
    %v409 = vmax.f32 %v351, 0.0
    %v410 = vmax.f32 %v356, 0.0
    %v411 = vmax.f32 %v361, 0.0
    %v412 = vmax.f32 %v366, 0.0
    %v413 = vmax.f32 %v371, 0.0
    %v414 = vmax.f32 %v376, 0.0
    %v415 = vmax.f32 %v381, 0.0
    %v416 = vmax.f32 %v386, 0.0
    %v417 = vmax.f32 %v391, 0.0
    %v418 = vmax.f32 %v396, 0.0
    %v419 = vmax.f32 %v401, 0.0
    %420 = vset.pattern.permute.xlu0 1
    %421 = vperm.xlu0 %420, %v66
    %v422 = vpop.permute.xlu0 %421
    %424 = vset.pattern.permute.xlu0 1
    %425 = vperm.xlu0 %424, %v67
    %v426 = vpop.permute.xlu0 %425
    %428 = vset.pattern.permute.xlu0 1
    %429 = vperm.xlu0 %428, %v68
    %v430 = vpop.permute.xlu0 %429
    %432 = vset.pattern.permute.xlu0 1
    %433 = vperm.xlu0 %432, %v69
    %v434 = vpop.permute.xlu0 %433
    %436 = vset.pattern.permute.xlu0 1
    %437 = vperm.xlu0 %436, %v70
    %v438 = vpop.permute.xlu0 %437
    %440 = vset.pattern.permute.xlu0 1
    %441 = vperm.xlu0 %440, %v71
    %v442 = vpop.permute.xlu0 %441
    %444 = vset.pattern.permute.xlu0 1
    %445 = vperm.xlu0 %444, %v72
    %v446 = vpop.permute.xlu0 %445
    %448 = vset.pattern.permute.xlu0 1
    %449 = vperm.xlu0 %448, %v73
    %v450 = vpop.permute.xlu0 %449
    %452 = vset.pattern.permute.xlu0 1
    %453 = vperm.xlu0 %452, %v74
    %v454 = vpop.permute.xlu0 %453
    %456 = vset.pattern.permute.xlu0 1
    %457 = vperm.xlu0 %456, %v75
    %v458 = vpop.permute.xlu0 %457
    %460 = vset.pattern.permute.xlu0 1
    %461 = vperm.xlu0 %460, %v76
    %v462 = vpop.permute.xlu0 %461
    %464 = vset.pattern.permute.xlu0 1
    %465 = vperm.xlu0 %464, %v77
    %v466 = vpop.permute.xlu0 %465
    %468 = vset.pattern.permute.xlu0 1
    %469 = vperm.xlu0 %468, %v78
    %v470 = vpop.permute.xlu0 %469
    %472 = vset.pattern.permute.xlu0 1
    %473 = vperm.xlu0 %472, %v79
    %v474 = vpop.permute.xlu0 %473
    %476 = vset.pattern.permute.xlu0 1
    %477 = vperm.xlu0 %476, %v80
    %v478 = vpop.permute.xlu0 %477
    %480 = vset.pattern.permute.xlu0 1
    %481 = vperm.xlu0 %480, %v81
    %v482 = vpop.permute.xlu0 %481
    %484 = vmatprep.subr.mxu0 0.0
    %485 = vmatpush1.msra.mxu0 %v404
    %486 = vmatprep.subr.mxu0 0.0
    %487 = vmatpush1.msra.mxu0 %v405
    %488 = vmatprep.subr.mxu0 0.0
    %489 = vmatpush1.msra.mxu0 %v406
    %490 = vmatprep.subr.mxu0 0.0
    %491 = vmatpush1.msra.mxu0 %v407
    %492 = vmatprep.subr.mxu0 0.0
    %493 = vmatpush1.msra.mxu0 %v408
    %494 = vmatprep.subr.mxu0 0.0
    %495 = vmatpush1.msra.mxu0 %v409
    %496 = vmatprep.subr.mxu0 0.0
    %497 = vmatpush1.msra.mxu0 %v410
    %498 = vmatprep.subr.mxu0 0.0
    %499 = vmatpush1.msra.mxu0 %v411
    %500 = vmatprep.subr.mxu0 0.0
    %501 = vmatpush1.msra.mxu0 %v412
    %502 = vmatprep.subr.mxu0 0.0
    %503 = vmatpush1.msra.mxu0 %v413
    %504 = vmatprep.subr.mxu0 0.0
    %505 = vmatpush1.msra.mxu0 %v414
    %506 = vmatprep.subr.mxu0 0.0
    %507 = vmatpush1.msra.mxu0 %v415
    %508 = vmatprep.subr.mxu0 0.0
    %509 = vmatpush1.msra.mxu0 %v416
    %510 = vmatprep.subr.mxu0 0.0
    %511 = vmatpush1.msra.mxu0 %v417
    %512 = vmatprep.subr.mxu0 0.0
    %513 = vmatpush1.msra.mxu0 %v418
    %514 = vmatprep.subr.mxu0 0.0
    %515 = vmatpush1.msra.mxu0 %v419
    %516 = vmatprep.subr.mxu0 0.0
    %517 = vmatpush1.msra.mxu0 0.0
    %518 = vmatprep.subr.mxu0 0.0
    %519 = vmatpush1.msra.mxu0 0.0
    %520 = vmatprep.subr.mxu0 0.0
    %521 = vmatpush1.msra.mxu0 0.0
    %522 = vmatprep.subr.mxu0 0.0
    %523 = vmatpush1.msra.mxu0 0.0
    %524 = vmatprep.subr.mxu0 0.0
    %525 = vmatpush1.msra.mxu0 0.0
    %526 = vmatprep.subr.mxu0 0.0
    %527 = vmatpush1.msra.mxu0 0.0
    %528 = vmatprep.subr.mxu0 0.0
    %529 = vmatpush1.msra.mxu0 0.0
    %530 = vmatprep.subr.mxu0 0.0
    %531 = vmatpush1.msra.mxu0 0.0
    %532 = vmatprep.subr.mxu0 0.0
    %533 = vmatpush1.msra.mxu0 0.0
    %534 = vmatprep.subr.mxu0 0.0
    %535 = vmatpush1.msra.mxu0 0.0
    %536 = vmatprep.subr.mxu0 0.0
    %537 = vmatpush1.msra.mxu0 0.0
    %538 = vmatprep.subr.mxu0 0.0
    %539 = vmatpush1.msra.mxu0 0.0
    %540 = vmatprep.subr.mxu0 0.0
    %541 = vmatpush1.msra.mxu0 0.0
    %542 = vmatprep.subr.mxu0 0.0
    %543 = vmatpush1.msra.mxu0 0.0
    %544 = vmatprep.subr.mxu0 0.0
    %545 = vmatpush1.msra.mxu0 0.0
    %546 = vmatprep.subr.mxu0 0.0
    %547 = vmatpush1.msra.mxu0 0.0
    %548 = vmatprep.mubr.f32.mxu0 0.0
    %549 = vmatmul.mubr.f32.gmra.mrb[0].mxu0 %v50
    %v550 = vpop.f32.mrb[0].mxu0
    %v551 = vadd.f32 %v422, %v550
    %v552 = vpop.f32.mrb[0].mxu0
    %553 = vmatprep.mubr.f32.mxu0 0.0
    %554 = vmatmul.mubr.f32.gmra.mrb[0].mxu0 %v51
    %v555 = vpop.f32.mrb[0].mxu0
    %v556 = vadd.f32 %v426, %v555
    %v557 = vpop.f32.mrb[0].mxu0
    %558 = vmatprep.mubr.f32.mxu0 0.0
    %559 = vmatmul.mubr.f32.gmra.mrb[0].mxu0 %v52
    %v560 = vpop.f32.mrb[0].mxu0
    %v561 = vadd.f32 %v430, %v560
    %v562 = vpop.f32.mrb[0].mxu0
    %563 = vmatprep.mubr.f32.mxu0 0.0
    %564 = vmatmul.mubr.f32.gmra.mrb[0].mxu0 %v53
    %v565 = vpop.f32.mrb[0].mxu0
    %v566 = vadd.f32 %v434, %v565
    %v567 = vpop.f32.mrb[0].mxu0
    %568 = vmatprep.mubr.f32.mxu0 0.0
    %569 = vmatmul.mubr.f32.gmra.mrb[0].mxu0 %v54
    %v570 = vpop.f32.mrb[0].mxu0
    %v571 = vadd.f32 %v438, %v570
    %v572 = vpop.f32.mrb[0].mxu0
    %573 = vmatprep.mubr.f32.mxu0 0.0
    %574 = vmatmul.mubr.f32.gmra.mrb[0].mxu0 %v55
    %v575 = vpop.f32.mrb[0].mxu0
    %v576 = vadd.f32 %v442, %v575
    %v577 = vpop.f32.mrb[0].mxu0
    %578 = vmatprep.mubr.f32.mxu0 0.0
    %579 = vmatmul.mubr.f32.gmra.mrb[0].mxu0 %v56
    %v580 = vpop.f32.mrb[0].mxu0
    %v581 = vadd.f32 %v446, %v580
    %v582 = vpop.f32.mrb[0].mxu0
    %583 = vmatprep.mubr.f32.mxu0 0.0
    %584 = vmatmul.mubr.f32.gmra.mrb[0].mxu0 %v57
    %v585 = vpop.f32.mrb[0].mxu0
    %v586 = vadd.f32 %v450, %v585
    %v587 = vpop.f32.mrb[0].mxu0
    %588 = vmatprep.mubr.f32.mxu0 0.0
    %589 = vmatmul.mubr.f32.gmra.mrb[0].mxu0 %v58
    %v590 = vpop.f32.mrb[0].mxu0
    %v591 = vadd.f32 %v454, %v590
    %v592 = vpop.f32.mrb[0].mxu0
    %593 = vmatprep.mubr.f32.mxu0 0.0
    %594 = vmatmul.mubr.f32.gmra.mrb[0].mxu0 %v59
    %v595 = vpop.f32.mrb[0].mxu0
    %v596 = vadd.f32 %v458, %v595
    %v597 = vpop.f32.mrb[0].mxu0
    %598 = vmatprep.mubr.f32.mxu0 0.0
    %599 = vmatmul.mubr.f32.gmra.mrb[0].mxu0 %v60
    %v600 = vpop.f32.mrb[0].mxu0
    %v601 = vadd.f32 %v462, %v600
    %v602 = vpop.f32.mrb[0].mxu0
    %603 = vmatprep.mubr.f32.mxu0 0.0
    %604 = vmatmul.mubr.f32.gmra.mrb[0].mxu0 %v61
    %v605 = vpop.f32.mrb[0].mxu0
    %v606 = vadd.f32 %v466, %v605
    %v607 = vpop.f32.mrb[0].mxu0
    %608 = vmatprep.mubr.f32.mxu0 0.0
    %609 = vmatmul.mubr.f32.gmra.mrb[0].mxu0 %v62
    %v610 = vpop.f32.mrb[0].mxu0
    %v611 = vadd.f32 %v470, %v610
    %v612 = vpop.f32.mrb[0].mxu0
    %613 = vmatprep.mubr.f32.mxu0 0.0
    %614 = vmatmul.mubr.f32.gmra.mrb[0].mxu0 %v63
    %v615 = vpop.f32.mrb[0].mxu0
    %v616 = vadd.f32 %v474, %v615
    %v617 = vpop.f32.mrb[0].mxu0
    %618 = vmatprep.mubr.f32.mxu0 0.0
    %619 = vmatmul.mubr.f32.gmra.mrb[0].mxu0 %v64
    %v620 = vpop.f32.mrb[0].mxu0
    %v621 = vadd.f32 %v478, %v620
    %v622 = vpop.f32.mrb[0].mxu0
    %623 = vmatprep.mubr.f32.mxu0 0.0
    %624 = vmatmul.mubr.f32.gmra.mrb[0].mxu0 %v65
    %v625 = vpop.f32.mrb[0].mxu0
    %v626 = vadd.f32 %v482, %v625
    %v627 = vpop.f32.mrb[0].mxu0
    %628 = vdwg.mxu0
    %v629 = vmax.f32 %v551, 0.0
    %v630 = vmax.f32 %v556, 0.0
    %v631 = vmax.f32 %v561, 0.0
    %v632 = vmax.f32 %v566, 0.0
    %v633 = vmax.f32 %v571, 0.0
    %v634 = vmax.f32 %v576, 0.0
    %v635 = vmax.f32 %v581, 0.0
    %v636 = vmax.f32 %v586, 0.0
    %v637 = vmax.f32 %v591, 0.0
    %v638 = vmax.f32 %v596, 0.0
    %v639 = vmax.f32 %v601, 0.0
    %v640 = vmax.f32 %v606, 0.0
    %v641 = vmax.f32 %v611, 0.0
    %v642 = vmax.f32 %v616, 0.0
    %v643 = vmax.f32 %v621, 0.0
    %v644 = vmax.f32 %v626, 0.0
    %645 = vset.pattern.permute.xlu0 2
    %646 = vperm.xlu0 %645, %v66
    %v647 = vpop.permute.xlu0 %646
    %649 = vset.pattern.permute.xlu0 2
    %650 = vperm.xlu0 %649, %v67
    %v651 = vpop.permute.xlu0 %650
    %653 = vset.pattern.permute.xlu0 2
    %654 = vperm.xlu0 %653, %v68
    %v655 = vpop.permute.xlu0 %654
    %657 = vset.pattern.permute.xlu0 2
    %658 = vperm.xlu0 %657, %v69
    %v659 = vpop.permute.xlu0 %658
    %661 = vset.pattern.permute.xlu0 2
    %662 = vperm.xlu0 %661, %v70
    %v663 = vpop.permute.xlu0 %662
    %665 = vset.pattern.permute.xlu0 2
    %666 = vperm.xlu0 %665, %v71
    %v667 = vpop.permute.xlu0 %666
    %669 = vset.pattern.permute.xlu0 2
    %670 = vperm.xlu0 %669, %v72
    %v671 = vpop.permute.xlu0 %670
    %673 = vset.pattern.permute.xlu0 2
    %674 = vperm.xlu0 %673, %v73
    %v675 = vpop.permute.xlu0 %674
    %677 = vset.pattern.permute.xlu0 2
    %678 = vperm.xlu0 %677, %v74
    %v679 = vpop.permute.xlu0 %678
    %681 = vset.pattern.permute.xlu0 2
    %682 = vperm.xlu0 %681, %v75
    %v683 = vpop.permute.xlu0 %682
    %685 = vset.pattern.permute.xlu0 2
    %686 = vperm.xlu0 %685, %v76
    %v687 = vpop.permute.xlu0 %686
    %689 = vset.pattern.permute.xlu0 2
    %690 = vperm.xlu0 %689, %v77
    %v691 = vpop.permute.xlu0 %690
    %693 = vset.pattern.permute.xlu0 2
    %694 = vperm.xlu0 %693, %v78
    %v695 = vpop.permute.xlu0 %694
    %697 = vset.pattern.permute.xlu0 2
    %698 = vperm.xlu0 %697, %v79
    %v699 = vpop.permute.xlu0 %698
    %701 = vset.pattern.permute.xlu0 2
    %702 = vperm.xlu0 %701, %v80
    %v703 = vpop.permute.xlu0 %702
    %705 = vset.pattern.permute.xlu0 2
    %706 = vperm.xlu0 %705, %v81
    %v707 = vpop.permute.xlu0 %706
    %v709 = vmul.f32 %v629, %v647
    %v710 = vmul.f32 %v630, %v651
    %v711 = vmul.f32 %v631, %v655
    %v712 = vmul.f32 %v632, %v659
    %v713 = vmul.f32 %v633, %v663
    %v714 = vmul.f32 %v634, %v667
    %v715 = vmul.f32 %v635, %v671
    %v716 = vmul.f32 %v636, %v675
    %v717 = vmul.f32 %v637, %v679
    %v718 = vmul.f32 %v638, %v683
    %v719 = vmul.f32 %v639, %v687
    %v720 = vmul.f32 %v640, %v691
    %v721 = vmul.f32 %v641, %v695
    %v722 = vmul.f32 %v642, %v699
    %v723 = vmul.f32 %v643, %v703
    %v724 = vmul.f32 %v644, %v707
    %v725 = vadd.f32 %v709, %v710
    %v726 = vadd.f32 %v725, %v711
    %v727 = vadd.f32 %v726, %v712
    %v728 = vadd.f32 %v727, %v713
    %v729 = vadd.f32 %v728, %v714
    %v730 = vadd.f32 %v729, %v715
    %v731 = vadd.f32 %v730, %v716
    %v732 = vadd.f32 %v731, %v717
    %v733 = vadd.f32 %v732, %v718
    %v734 = vadd.f32 %v733, %v719
    %v735 = vadd.f32 %v734, %v720
    %v736 = vadd.f32 %v735, %v721
    %v737 = vadd.f32 %v736, %v722
    %v738 = vadd.f32 %v737, %v723
    %v739 = vadd.f32 %v738, %v724
    %v740 = vrot.slane %v739, 4
    %v741 = vadd.f32 %v739, %v740
    %v742 = vrot.slane %v741, 2
    %v743 = vadd.f32 %v741, %v742
    %v744 = vrot.slane %v743, 1
    %v745 = vadd.f32 %v743, %v744
    %746 = vset.pattern.permute.xlu0 3
    %747 = vperm.xlu0 %746, %v66
    %v748 = vpop.permute.xlu0 %747
    %v750 = vadd.f32 %v745, %v748
    %v751 = vtanh.pop %v750
    %v752 = vmul.f32 %v751, 250.0
    %753 = vst [vmem:[#allocation2] sm:$0x1] %v752
    // Predicated region
    $region18: #{tpu_custom_call.1} parent=1 // pred_check
      _
    $region19: #{tpu_custom_call.1} parent=1 // pred_check_branch
      %755 = sbr.rel (0) target = $region21
    $region20: #{tpu_custom_call.1} parent=1 // pred_region
      %s757 = ssub.s32 16, 16
      %758 = vsyncadd [#allocation3], %s757
      %s760 = sshll.u32 [#allocation2], 4
      %s761 = int_to_ptr.vmem [resolvable:$true] %s760
      %763 = dma.vmem_to_hbm [thread:$0]  %s761, 16, %s4, [#allocation3]
    $region21: #{tpu_custom_call.1} parent=1 // pred_fallthru
      _
    // Predicated region
    $region22: #{tpu_custom_call.1} parent=1 // pred_check
      _
    $region23: #{tpu_custom_call.1} parent=1 // pred_check_branch
      %765 = sbr.rel (0) target = $region25
    $region24: #{tpu_custom_call.1} parent=1 // pred_region
      %766 = dma.done [#allocation3], 16
    $region25: #{tpu_custom_call.1} parent=1 // pred_fallthru
      _
    %767 = vsyncpa [#allocation3], 1

</llo_original>
